<compile_context>
chip_gen: v7x
topology: tpu7x:2x2x1
jax: 0.10.0
libtpu: 0.0.40
codegen_flags: <defaults>
</compile_context>

<pallas_src>
import functools

import jax
import jax.numpy as jnp
from jax.experimental import pallas as pl
from jax.experimental.pallas import tpu as pltpu


def _round_up(a: int, b: int) -> int:
    return ((a + b - 1) // b) * b


def _choose_tile(dim: int, align: int, target: int):
    """Return (padded_dim, tile): tile is a multiple of `align` dividing padded_dim.

    Prefers padding only to `align` (cheap) and taking the largest divisor <= target;
    falls back to padding up to a multiple of `target` when the best divisor is poor
    (< target/2), so awkward shapes still get big, lane-dense tiles.
    """
    target = max(target, align)
    dim_aligned = _round_up(dim, align)
    if dim_aligned <= target:
        return dim_aligned, dim_aligned
    best = align
    cand = align
    while cand <= target:
        if dim_aligned % cand == 0:
            best = cand
        cand += align
    if 2 * best >= target:
        return dim_aligned, best
    return _round_up(dim, target), target


def _vmem_footprint(tm, tn, tk, in_bytes, out_bytes, with_scratch):
    # Double-buffered x, w, bias and output blocks + optional f32 accumulator.
    fp = 2 * (tm * tk * in_bytes + tk * tn * in_bytes + tn * 4 + tm * tn * out_bytes)
    if with_scratch:
        fp += tm * tn * 4
    return fp


def _linear_kernel_inplace(x_ref, w_ref, b_ref, o_ref):
    # f32 output: accumulate straight into the output block, which stays VMEM-resident
    # across the k axis (its index_map ignores k). Bias is the k==0 initializer.
    @pl.when(pl.program_id(2) == 0)
    def _():
        o_ref[...] = jnp.broadcast_to(b_ref[...], o_ref.shape).astype(o_ref.dtype)

    o_ref[...] += jnp.dot(x_ref[...], w_ref[...], preferred_element_type=jnp.float32)


def _linear_kernel_scratch(x_ref, w_ref, b_ref, o_ref, acc_ref):
    # Non-f32 output: keep a f32 VMEM accumulator, store + cast once at the last k.
    k = pl.program_id(2)

    @pl.when(k == 0)
    def _():
        acc_ref[...] = jnp.zeros_like(acc_ref)

    acc_ref[...] += jnp.dot(x_ref[...], w_ref[...], preferred_element_type=jnp.float32)

    @pl.when(k == pl.num_programs(2) - 1)
    def _():
        o_ref[...] = (acc_ref[...] + b_ref[...]).astype(o_ref.dtype)


_VMEM_BUDGET = 40 * 1024 * 1024  # leaves headroom inside v7x's 64 MiB physical VMEM


def linear(x, w, b, *, tm=512, tn=512, tk=None, cast_inputs_to_bf16=True):
    """x: (M, K), w: (K, N), b: (N,) -> (M, N), computed as x @ w + b.

    bf16 MXU feed by default with f32 accumulation (pre-cast `w` to bf16 once at
    parameter-load time to avoid a per-call weight cast). Set
    cast_inputs_to_bf16=False for exact f32 math.
    """
    M, K = x.shape
    K2, N = w.shape
    assert K == K2, "in_features mismatch"
    assert b.shape == (N,)
    out_dtype = x.dtype

    compute_dtype = (
        jnp.bfloat16 if cast_inputs_to_bf16 else jnp.promote_types(x.dtype, w.dtype)
    )
    if x.dtype != compute_dtype:
        x = x.astype(compute_dtype)
    if w.dtype != compute_dtype:
        # NOTE: prefer pre-casting the weight once outside this call; this path is a
        # full extra HBM read+write of the weight per call.
        w = w.astype(compute_dtype)
    # TODO(synk): optional fp8 weight path for v7x inference (MXU fp8) not implemented.

    in_bytes = jnp.dtype(compute_dtype).itemsize
    out_bytes = jnp.dtype(out_dtype).itemsize
    # Sublane packing multiple for the second-to-last dim (f32: 8, bf16: 16, int8: 32).
    sub_m = max(8, 32 // min(in_bytes, out_bytes))

    use_inplace = out_dtype == jnp.float32

    if tk is None:
        tk = 1024 if in_bytes <= 2 else 512
    tm_t, tn_t, tk_t = max(tm, sub_m), max(tn, 128), max(tk, 128)

    # Shrink tile targets (largest first) until the double-buffered footprint fits.
    for _ in range(16):
        M_pad, tm_c = _choose_tile(M, sub_m, tm_t)
        N_pad, tn_c = _choose_tile(N, 128, tn_t)
        K_pad, tk_c = _choose_tile(K, 128, tk_t)
        if _vmem_footprint(tm_c, tn_c, tk_c, in_bytes, out_bytes, not use_inplace) <= _VMEM_BUDGET:
            break
        if tk_t >= max(tm_t, tn_t) and tk_t > 128:
            tk_t //= 2
        elif tn_t >= tm_t and tn_t > 128:
            tn_t //= 2
        elif tm_t > sub_m:
            tm_t = max(tm_t // 2, sub_m)
        else:
            break
    tm, tn, tk = tm_c, tn_c, tk_c

    # Keep both v7x TensorCores busy: ensure >= 2 parallel (i, j) tiles when possible.
    if (M_pad // tm) * (N_pad // tn) < 2:
        if tn % 256 == 0:
            tn //= 2
        elif tm % (2 * sub_m) == 0:
            tm //= 2

    # Pad only what is needed (K tail must be zero for dot correctness; M/N tails are
    # sliced away). These are no-ops for already-aligned shapes.
    if (M_pad, K_pad) != (M, K):
        x = jnp.pad(x, ((0, M_pad - M), (0, K_pad - K)))
    if (K_pad, N_pad) != (K, N):
        w = jnp.pad(w, ((0, K_pad - K), (0, N_pad - N)))
    b2 = (jnp.pad(b, (0, N_pad - N)) if N_pad != N else b).reshape(1, N_pad).astype(jnp.float32)

    grid_m, grid_n, grid_k = M_pad // tm, N_pad // tn, K_pad // tk
    grid = (grid_m, grid_n, grid_k)

    # Advisory, but reflects real traffic (x/w re-streaming factors, padded shapes).
    cost = pl.CostEstimate(
        flops=2 * M_pad * N_pad * K_pad,
        transcendentals=0,
        bytes_accessed=(
            grid_n * M_pad * K_pad * in_bytes      # x streamed once per N tile
            + grid_m * K_pad * N_pad * in_bytes    # w streamed once per M tile
            + N_pad * 4                            # bias
            + M_pad * N_pad * out_bytes            # output writeback
        ),
    )

    footprint = _vmem_footprint(tm, tn, tk, in_bytes, out_bytes, not use_inplace)
    vmem_limit = int(min(max(footprint + (8 << 20), 16 << 20), 48 << 20))

    kernel = _linear_kernel_inplace if use_inplace else _linear_kernel_scratch
    scratch = [] if use_inplace else [pltpu.VMEM((tm, tn), jnp.float32)]

    out_padded = pl.pallas_call(
        kernel,
        out_shape=jax.ShapeDtypeStruct((M_pad, N_pad), out_dtype),
        grid_spec=pltpu.PrefetchScalarGridSpec(
            num_scalar_prefetch=0,
            grid=grid,
            in_specs=[
                pl.BlockSpec((tm, tk), lambda i, j, k: (i, k)),   # x tile
                pl.BlockSpec((tk, tn), lambda i, j, k: (k, j)),   # weight tile (streamed)
                pl.BlockSpec((1, tn), lambda i, j, k: (0, j)),    # bias tile
            ],
            out_specs=pl.BlockSpec((tm, tn), lambda i, j, k: (i, j)),
            scratch_shapes=scratch,
        ),
        compiler_params=pltpu.CompilerParams(
            dimension_semantics=("parallel", "parallel", "arbitrary"),
            vmem_limit_bytes=vmem_limit,
        ),
        cost_estimate=cost,
    )(x, w, b2)

    if (M_pad, N_pad) != (M, N):
        out_padded = out_padded[:M, :N]
    return out_padded


if __name__ == "__main__":
    # Deterministic parameter init (mirrors torch.randn shapes from __init__).
    in_features, out_features = 32, 16
    batch = 8

    key = jax.random.PRNGKey(0)
    kx, kw, kb = jax.random.split(key, 3)
    x = jax.random.normal(kx, (batch, in_features), dtype=jnp.float32)
    w = jax.random.normal(kw, (in_features, out_features), dtype=jnp.float32)
    b = jax.random.normal(kb, (out_features,), dtype=jnp.float32)

    linear_f32 = jax.jit(functools.partial(linear, cast_inputs_to_bf16=False))
    linear_bf16 = jax.jit(linear)  # default: bf16 MXU feed, f32 accumulate

    # --- Exact f32 path vs. plain JAX reference -------------------------------
    out = jax.block_until_ready(linear_f32(x, w, b))
    ref = x @ w + b
    assert out.shape == (batch, out_features)
    assert jnp.allclose(out, ref, atol=1e-5, rtol=1e-5), "mismatch vs reference (f32)"

    # --- Default bf16-feed path (weight pre-cast once, as recommended) --------
    w_bf = w.astype(jnp.bfloat16)
    out_bf = jax.block_until_ready(linear_bf16(x, w_bf, b))
    ref_bf = x.astype(jnp.bfloat16).astype(jnp.float32) @ w_bf.astype(jnp.float32) + b
    assert jnp.allclose(out_bf, ref_bf, atol=5e-2, rtol=5e-3), "mismatch vs reference (bf16)"

    # --- Larger ragged shape to exercise M/N/K tiling & padding ---------------
    M2, K2_, N2 = 260, 384, 300
    x2 = jax.random.normal(kx, (M2, K2_), dtype=jnp.float32)
    w2 = jax.random.normal(kw, (K2_, N2), dtype=jnp.float32)
    b2 = jax.random.normal(kb, (N2,), dtype=jnp.float32)

    out2 = jax.block_until_ready(linear_f32(x2, w2, b2))
    ref2 = x2 @ w2 + b2
    assert jnp.allclose(out2, ref2, atol=1e-4, rtol=1e-4), "mismatch vs reference (f32, tiled)"

    w2_bf = w2.astype(jnp.bfloat16)
    out2_bf = jax.block_until_ready(linear_bf16(x2, w2_bf, b2))
    ref2_bf = x2.astype(jnp.bfloat16).astype(jnp.float32) @ w2_bf.astype(jnp.float32) + b2
    assert jnp.allclose(out2_bf, ref2_bf, atol=5e-2, rtol=5e-3), "mismatch vs reference (bf16, tiled)"

    print("KERNEL_OK")
</pallas_src>

<mosaic_0001>
module attributes {stable_mosaic.version = 11 : i64} {
  func.func @_linear_kernel_inplace(%arg0: i32, %arg1: i32, %arg2: i32, %arg3: memref<8x128xf32, #tpu.memory_space<vmem>>, %arg4: memref<128x128xf32, #tpu.memory_space<vmem>>, %arg5: memref<1x128xf32, #tpu.memory_space<vmem>>, %arg6: memref<8x128xf32, #tpu.memory_space<vmem>>) attributes {dimension_semantics = [#tpu.dimension_semantics<parallel>, #tpu.dimension_semantics<parallel>, #tpu.dimension_semantics<arbitrary>], iteration_bounds = array<i64: 1, 1, 1>, scalar_prefetch = 0 : i64, scratch_operands = 0 : i64, tpu.core_type = #tpu.core_type<tc>, window_params = [{transform_indices = @transform_0, window_bounds = array<i64: 8, 128>}, {transform_indices = @transform_1, window_bounds = array<i64: 128, 128>}, {transform_indices = @transform_2, window_bounds = array<i64: 1, 128>}, {transform_indices = @transform_3, window_bounds = array<i64: 8, 128>}]} {
    %c0_i32 = arith.constant 0 : i32
    %0 = arith.cmpi eq, %arg2, %c0_i32 : i32
    %1 = arith.extui %0 : i1 to i32
    %c0_i32_0 = arith.constant 0 : i32
    %2 = arith.cmpi ne, %1, %c0_i32_0 : i32
    scf.if %2 {
      %c0_8 = arith.constant 0 : index
      %c0_9 = arith.constant 0 : index
      %9 = vector.load %arg5[%c0_8, %c0_9] : memref<1x128xf32, #tpu.memory_space<vmem>>, vector<1x128xf32>
      %10 = vector.shape_cast %9 : vector<1x128xf32> to vector<1x128xf32>
      %11 = vector.broadcast %10 : vector<1x128xf32> to vector<8x128xf32>
      %c0_10 = arith.constant 0 : index
      %c0_11 = arith.constant 0 : index
      %12 = vector.load %arg6[%c0_10, %c0_11] : memref<8x128xf32, #tpu.memory_space<vmem>>, vector<8x128xf32>
      tpu.vector_store %arg6[%c0_10, %c0_11], %11 {strides = array<i32>} : memref<8x128xf32, #tpu.memory_space<vmem>>, vector<8x128xf32>,
    } else {
    }
    %c0 = arith.constant 0 : index
    %c0_1 = arith.constant 0 : index
    %3 = vector.load %arg6[%c0, %c0_1] : memref<8x128xf32, #tpu.memory_space<vmem>>, vector<8x128xf32>
    %c0_2 = arith.constant 0 : index
    %c0_3 = arith.constant 0 : index
    %4 = vector.load %arg3[%c0_2, %c0_3] : memref<8x128xf32, #tpu.memory_space<vmem>>, vector<8x128xf32>
    %c0_4 = arith.constant 0 : index
    %c0_5 = arith.constant 0 : index
    %5 = vector.load %arg4[%c0_4, %c0_5] : memref<128x128xf32, #tpu.memory_space<vmem>>, vector<128x128xf32>
    %cst = arith.constant dense<0.000000e+00> : vector<8x128xf32>
    %6 = tpu.matmul %4, %5, %cst {dimension_numbers = #tpu.dot_dimension_numbers<[1], [0], [0], [1], [0, 0, 1, 1], [], []>} : vector<8x128xf32>, vector<128x128xf32>, vector<8x128xf32> -> vector<8x128xf32>
    %7 = arith.addf %3, %6 : vector<8x128xf32>
    %c0_6 = arith.constant 0 : index
    %c0_7 = arith.constant 0 : index
    %8 = vector.load %arg6[%c0_6, %c0_7] : memref<8x128xf32, #tpu.memory_space<vmem>>, vector<8x128xf32>
    tpu.vector_store %arg6[%c0_6, %c0_7], %7 {strides = array<i32>} : memref<8x128xf32, #tpu.memory_space<vmem>>, vector<8x128xf32>,
    return
  }
  func.func @transform_0(%arg0: i32, %arg1: i32, %arg2: i32) -> (i32, i32) {
    %c0_i32 = arith.constant 0 : i32
    return %arg0, %arg2 : i32, i32
  }
  func.func @transform_1(%arg0: i32, %arg1: i32, %arg2: i32) -> (i32, i32) {
    %c0_i32 = arith.constant 0 : i32
    return %arg2, %arg1 : i32, i32
  }
  func.func @transform_2(%arg0: i32, %arg1: i32, %arg2: i32) -> (i32, i32) {
    %c0_i32 = arith.constant 0 : i32
    %c0_i32_0 = arith.constant 0 : i32
    return %c0_i32, %arg1 : i32, i32
  }
  func.func @transform_3(%arg0: i32, %arg1: i32, %arg2: i32) -> (i32, i32) {
    %c0_i32 = arith.constant 0 : i32
    return %arg0, %arg1 : i32, i32
  }
}

</mosaic_0001>

<llo_original>
// kernel: linear.1
$region0: #{linear.1}
  #allocation0 [shape = 'u32[]', space=smem, size = 0x4, offset = 0x4, fixed_abs, tag = 'smem constant byte address 0x4 - core index']
  #allocation1 [shape = 'u32[144,128]{1,0:T(1,128)}', space=vmem, size = 0x12000, scoped, tag = 'internal scratch']
  %s0 = inlined_call_operand.vmem [shape: f32[8,128], index: 0, kind: input, shape index: {}]
  %s1 = inlined_call_operand.vmem [shape: f32[128,128], index: 1, kind: input, shape index: {}]
  %s2 = inlined_call_operand.vmem [shape: f32[1,128], index: 2, kind: input, shape index: {}]
  %s3 = inlined_call_operand.hbm [shape: f32[8,128], index: 3, kind: output, shape index: {}]
  %s4 = sld [smem:[#allocation0]]
  $region26: #{linear.1} parent=0
    _
  %s6 = ssub.s32 1, %s4
  %s7 = scalar_select 0, %s6, %s4
  $region1: #{linear.1} parent=0
    #allocation2 [shape = 'u8[4096]{0}', space=vmem, size = 0x1000, scoped, tag = 'output window, operand 0, single buffered']
    #allocation3 [shape = 's32[1]{0}', space=sflag, size = 0x4, scoped, tag = 'scoped memory for linear.1']
    %8 = vsyncpa [#allocation3], 0
    // Predicated region
    $region2: #{linear.1} parent=1 // pred_check
      _
    $region3: #{linear.1} parent=1 // pred_check_branch
      %10 = sbr.rel (0) target = $region5
    $region4: #{linear.1} parent=1 // pred_region
      _
    $region5: #{linear.1} parent=1 // pred_fallthru
      _
    // Predicated region
    $region6: #{linear.1} parent=1 // pred_check
      _
    $region7: #{linear.1} parent=1 // pred_check_branch
      %12 = sbr.rel (0) target = $region9
    $region8: #{linear.1} parent=1 // pred_region
      _
    $region9: #{linear.1} parent=1 // pred_fallthru
      _
    // Predicated region
    $region10: #{linear.1} parent=1 // pred_check
      _
    $region11: #{linear.1} parent=1 // pred_check_branch
      %14 = sbr.rel (0) target = $region13
    $region12: #{linear.1} parent=1 // pred_region
      _
    $region13: #{linear.1} parent=1 // pred_fallthru
      _
    %p15 = scmp.eq.s32.totalorder 0, 0
    // Predicated region
    $region14: #{linear.1} parent=1 // pred_check
      %p16 = pneg %p15
    $region15: #{linear.1} parent=1 // pred_check_branch
      %18 = sbr.rel (%p16) target = $region17
    $region16: #{linear.1} parent=1 // pred_region
      %v19 = vld [vmem:[%s2] sm:$0x1]
      %v21 = vlaneseq
      %v22 = vshrl.u32 %v21, 7
      %v23 = vsub.s32 0, %v22
      %v24 = vrot.slane %v19, %v23
      %26 = vst [vmem:[#allocation2] sm:$0xff] %v24
    $region17: #{linear.1} parent=1 // pred_fallthru
      _
    %v27 = vld [vmem:[#allocation2] sm:$0xff]
    %v28 = vld [vmem:[%s0] sm:$0xff]
    %v29 = vld [vmem:[%s1] sm:$0xff]
    %v30 = vld [vmem:[%s1 + $0x8] sm:$0xff]
    %v31 = vld [vmem:[%s1 + $0x10] sm:$0xff]
    %v32 = vld [vmem:[%s1 + $0x18] sm:$0xff]
    %v33 = vld [vmem:[%s1 + $0x20] sm:$0xff]
    %v34 = vld [vmem:[%s1 + $0x28] sm:$0xff]
    %v35 = vld [vmem:[%s1 + $0x30] sm:$0xff]
    %v36 = vld [vmem:[%s1 + $0x38] sm:$0xff]
    %v37 = vld [vmem:[%s1 + $0x40] sm:$0xff]
    %v38 = vld [vmem:[%s1 + $0x48] sm:$0xff]
    %v39 = vld [vmem:[%s1 + $0x50] sm:$0xff]
    %v40 = vld [vmem:[%s1 + $0x58] sm:$0xff]
    %v41 = vld [vmem:[%s1 + $0x60] sm:$0xff]
    %v42 = vld [vmem:[%s1 + $0x68] sm:$0xff]
    %v43 = vld [vmem:[%s1 + $0x70] sm:$0xff]
    %v44 = vld [vmem:[%s1 + $0x78] sm:$0xff]
    %45 = vmatprep.subr.mxu0 0.0
    %46 = vmatpush1.msra.mxu0 %v29
    %47 = vmatprep.subr.mxu0 0.0
    %48 = vmatpush1.msra.mxu0 %v30
    %49 = vmatprep.subr.mxu0 0.0
    %50 = vmatpush1.msra.mxu0 %v31
    %51 = vmatprep.subr.mxu0 0.0
    %52 = vmatpush1.msra.mxu0 %v32
    %53 = vmatprep.subr.mxu0 0.0
    %54 = vmatpush1.msra.mxu0 %v33
    %55 = vmatprep.subr.mxu0 0.0
    %56 = vmatpush1.msra.mxu0 %v34
    %57 = vmatprep.subr.mxu0 0.0
    %58 = vmatpush1.msra.mxu0 %v35
    %59 = vmatprep.subr.mxu0 0.0
    %60 = vmatpush1.msra.mxu0 %v36
    %61 = vmatprep.subr.mxu0 0.0
    %62 = vmatpush1.msra.mxu0 %v37
    %63 = vmatprep.subr.mxu0 0.0
    %64 = vmatpush1.msra.mxu0 %v38
    %65 = vmatprep.subr.mxu0 0.0
    %66 = vmatpush1.msra.mxu0 %v39
    %67 = vmatprep.subr.mxu0 0.0
    %68 = vmatpush1.msra.mxu0 %v40
    %69 = vmatprep.subr.mxu0 0.0
    %70 = vmatpush1.msra.mxu0 %v41
    %71 = vmatprep.subr.mxu0 0.0
    %72 = vmatpush1.msra.mxu0 %v42
    %73 = vmatprep.subr.mxu0 0.0
    %74 = vmatpush1.msra.mxu0 %v43
    %75 = vmatprep.subr.mxu0 0.0
    %76 = vmatpush1.msra.mxu0 %v44
    %77 = vmatprep.subr.mxu0 0.0
    %78 = vmatpush1.msra.mxu0 0.0
    %79 = vmatprep.subr.mxu0 0.0
    %80 = vmatpush1.msra.mxu0 0.0
    %81 = vmatprep.subr.mxu0 0.0
    %82 = vmatpush1.msra.mxu0 0.0
    %83 = vmatprep.subr.mxu0 0.0
    %84 = vmatpush1.msra.mxu0 0.0
    %85 = vmatprep.subr.mxu0 0.0
    %86 = vmatpush1.msra.mxu0 0.0
    %87 = vmatprep.subr.mxu0 0.0
    %88 = vmatpush1.msra.mxu0 0.0
    %89 = vmatprep.subr.mxu0 0.0
    %90 = vmatpush1.msra.mxu0 0.0
    %91 = vmatprep.subr.mxu0 0.0
    %92 = vmatpush1.msra.mxu0 0.0
    %93 = vmatprep.subr.mxu0 0.0
    %94 = vmatpush1.msra.mxu0 0.0
    %95 = vmatprep.subr.mxu0 0.0
    %96 = vmatpush1.msra.mxu0 0.0
    %97 = vmatprep.subr.mxu0 0.0
    %98 = vmatpush1.msra.mxu0 0.0
    %99 = vmatprep.subr.mxu0 0.0
    %100 = vmatpush1.msra.mxu0 0.0
    %101 = vmatprep.subr.mxu0 0.0
    %102 = vmatpush1.msra.mxu0 0.0
    %103 = vmatprep.subr.mxu0 0.0
    %104 = vmatpush1.msra.mxu0 0.0
    %105 = vmatprep.subr.mxu0 0.0
    %106 = vmatpush1.msra.mxu0 0.0
    %107 = vmatprep.subr.mxu0 0.0
    %108 = vmatpush1.msra.mxu0 0.0
    %109 = vmatprep.mubr.f32.mxu0 0.0
    %110 = vmatmul.mubr.f32.gmra.mrb[0].mxu0 %v28
    %v111 = vpop.f32.mrb[0].mxu0
    %v112 = vadd.f32 0.0, %v111
    %v113 = vpop.f32.mrb[0].mxu0
    %114 = vdwg.mxu0
    %v115 = vadd.f32 %v27, %v112
    %116 = vst [vmem:[#allocation2] sm:$0xff] %v115
    // Predicated region
    $region18: #{linear.1} parent=1 // pred_check
      _
    $region19: #{linear.1} parent=1 // pred_check_branch
      %118 = sbr.rel (0) target = $region21
    $region20: #{linear.1} parent=1 // pred_region
      %s120 = ssub.s32 128, 128
      %121 = vsyncadd [#allocation3], %s120
      %s123 = sshll.u32 [#allocation2], 4
      %s124 = int_to_ptr.vmem [resolvable:$true] %s123
      %126 = dma.vmem_to_hbm [thread:$0]  %s124, 128, %s3, [#allocation3]
    $region21: #{linear.1} parent=1 // pred_fallthru
      _
    // Predicated region
    $region22: #{linear.1} parent=1 // pred_check
      _
    $region23: #{linear.1} parent=1 // pred_check_branch
      %128 = sbr.rel (0) target = $region25
    $region24: #{linear.1} parent=1 // pred_region
      %129 = dma.done [#allocation3], 128
    $region25: #{linear.1} parent=1 // pred_fallthru
      _
    %130 = vsyncpa [#allocation3], 1

</llo_original>
